<compile_context>
chip_gen: v6e
topology: v6e:2x2x1
jax: 0.10.0
libtpu: 0.0.40
codegen_flags: <defaults>
</compile_context>

<pallas_src>
import jax
import jax.numpy as jnp
import numpy as np
from jax import lax
from jax.experimental import pallas as pl
from jax.experimental.pallas import tpu as pltpu

EPS = 1e-5
MATMUL_DTYPE = jnp.bfloat16      # MXU operand dtype (accumulation stays f32)
CONV_DTYPE = jnp.bfloat16        # HBM dtype of the conv intermediate between passes
VMEM_LIMIT = 32 * 1024 * 1024    # explicit scoped-VMEM limit (v5e default is 16 MiB)


# --------------------------------------------------------------------------
# Lane-dense folded layout helpers (run in the wrapper, not in the kernels)
# --------------------------------------------------------------------------
def _fold_factor(H, W, C):
    """How many image rows to fold into the 128-lane dimension."""
    wc = W * C
    if wc <= 128 and 128 % wc == 0:
        f = 128 // wc
        if H % f == 0:
            return f
    return 1


def _conv_band_matrices(w_oihw, W, F):
    """3x3 'same' conv as 3 banded matrices over a (F*W*C)-wide folded row.

    conv_folded[r] = sum_{d in 0..2} x_folded[r + d - 1] @ B[d]
    with zero rows standing in for the out-of-range (H-padding) folded rows.
    The W zero-padding and the fold-boundary coupling are baked into the band
    structure, so no padded-width buffer and no im2col are needed in-kernel.
    """
    C = w_oihw.shape[1]
    L = F * W * C
    idx = np.arange(L)
    j = idx // (W * C)            # image-row-within-fold
    wq = (idx // C) % W           # image column
    c = idx % C                   # channel
    j_in, w_in, c_in = j[None, :, None], wq[None, :, None], c[None, :, None]
    j_out, w_out, c_out = j[None, None, :], wq[None, None, :], c[None, None, :]
    d = np.arange(3)[:, None, None] - 1                  # folded-row offset -1,0,+1
    ky = F * d + j_in - j_out + 1                        # (3, L, L)
    kx = np.broadcast_to(w_in - w_out + 1, ky.shape)
    valid = (ky >= 0) & (ky <= 2) & (kx >= 0) & (kx <= 2)
    ky_c = np.clip(ky, 0, 2)
    kx_c = np.clip(kx, 0, 2)
    c_in_b = np.broadcast_to(c_in, ky.shape)
    c_out_b = np.broadcast_to(c_out, ky.shape)
    taps = w_oihw[c_out_b, c_in_b, ky_c, kx_c]           # tiny gather, (3, L, L)
    return jnp.where(jnp.asarray(valid), taps, 0.0).astype(MATMUL_DTYPE)


# --------------------------------------------------------------------------
# pass 1: 3x3 conv (banded matmuls) + centered per-lane BN partial statistics
# --------------------------------------------------------------------------
def _conv_stats_kernel(x_ref, w_ref, conv_ref, stats_ref, xp_ref):
    # x_ref    : (1, R, L)  folded lane-dense image rows, f32   (R = H//F, L = F*W*C)
    # w_ref    : (3, L, L)  banded conv matrices, bf16
    # conv_ref : (1, R, L)  conv output, bf16 (lane-dense HBM intermediate)
    # stats_ref: (1, 2, L)  per-lane [sum, sum((x - lane_mean)^2)] over the R rows
    # xp_ref   : (R+2, L)   f32 scratch; rows 0 and R+1 are the zero H halo
    _, R, L = x_ref.shape

    # Zero ONLY the 2-row halo, every step (scratch is per-core; see header).
    xp_ref[0:1, :] = jnp.zeros((1, L), xp_ref.dtype)
    xp_ref[R + 1:R + 2, :] = jnp.zeros((1, L), xp_ref.dtype)
    xp_ref[1:R + 1, :] = x_ref[0]

    # Three 128-deep, 128-wide MXU matmuls (bf16 operands, f32 accumulation).
    acc = jnp.dot(xp_ref[0:R, :].astype(MATMUL_DTYPE), w_ref[0],
                  preferred_element_type=jnp.float32)
    acc = acc + jnp.dot(xp_ref[1:R + 1, :].astype(MATMUL_DTYPE), w_ref[1],
                        preferred_element_type=jnp.float32)
    acc = acc + jnp.dot(xp_ref[2:R + 2, :].astype(MATMUL_DTYPE), w_ref[2],
                        preferred_element_type=jnp.float32)

    conv_ref[0] = acc.astype(conv_ref.dtype)

    # Centered per-lane BN partials (sublane reductions only; no lane movement).
    lane_sum = jnp.sum(acc, axis=0, keepdims=True)                 # (1, L)
    lane_mean = lane_sum * (1.0 / R)
    centered = acc - lane_mean
    lane_ssd = jnp.sum(centered * centered, axis=0, keepdims=True)  # (1, L)
    stats_ref[0] = jnp.concatenate([lane_sum, lane_ssd], axis=0)    # single store


# --------------------------------------------------------------------------
# pass 2: normalize + ReLU + residual add (fully lane-dense, 128-lane blocks)
# --------------------------------------------------------------------------
def _bn_relu_residual_kernel(x_ref, conv_ref, scale_ref, shift_ref, o_ref):
    # x_ref, o_ref: (1, R, L) f32;  conv_ref: (1, R, L) bf16;  scale/shift: (1, L) f32
    bn = conv_ref[0].astype(jnp.float32) * scale_ref[...] + shift_ref[...]
    o_ref[0] = x_ref[0] + jnp.maximum(bn, 0.0)


# --------------------------------------------------------------------------
# One residual stage: x + relu(batchnorm_train(conv3x3(x)))
# --------------------------------------------------------------------------
def _stage(x_nhwc, w_oihw, gamma, beta):
    N, H, W, C = x_nhwc.shape
    F = _fold_factor(H, W, C)
    L = F * W * C
    R = H // F
    band = _conv_band_matrices(w_oihw, W, F)          # (3, L, L) bf16, built once

    x_f = x_nhwc.reshape(N, R, L)                     # free metadata reshape

    # ---- pass 1: conv + per-lane BN partials (grid over batch, >= 2 steps) ----
    conv, stats = pl.pallas_call(
        _conv_stats_kernel,
        out_shape=(jax.ShapeDtypeStruct((N, R, L), CONV_DTYPE),
                   jax.ShapeDtypeStruct((N, 2, L), jnp.float32)),
        grid_spec=pltpu.PrefetchScalarGridSpec(
            num_scalar_prefetch=0,
            grid=(N,),
            in_specs=[
                pl.BlockSpec((1, R, L), lambda n: (n, 0, 0)),
                pl.BlockSpec((3, L, L), lambda n: (0, 0, 0)),
            ],
            out_specs=[
                pl.BlockSpec((1, R, L), lambda n: (n, 0, 0)),
                pl.BlockSpec((1, 2, L), lambda n: (n, 0, 0)),
            ],
            scratch_shapes=[pltpu.VMEM((R + 2, L), jnp.float32)],
        ),
        compiler_params=pltpu.CompilerParams(
            dimension_semantics=("parallel",),
            vmem_limit_bytes=VMEM_LIMIT),
    )(x_f, band)

    # ---- tiny XLA epilogue: merge per-lane partials -> per-channel affine ----
    # Parallel-variance merge (groups = one lane of one image, each with R rows):
    #   var = [ sum_g ssd_g + R * sum_g (m_g - m)^2 ] / (G * R)
    lane_sum = stats[:, 0, :]                                   # (N, L)
    lane_ssd = stats[:, 1, :]
    lane_mean = (lane_sum / R).reshape(N * (L // C), C)         # channel is last
    lane_ssd = lane_ssd.reshape(N * (L // C), C)
    groups = N * (L // C)
    mean = jnp.mean(lane_mean, axis=0)                          # (C,)
    var = (jnp.sum(lane_ssd, axis=0)
           + R * jnp.sum((lane_mean - mean[None, :]) ** 2, axis=0)) / (groups * R)
    scale = gamma * lax.rsqrt(var + EPS)
    shift = beta - mean * scale
    scale_l = jnp.tile(scale, L // C).reshape(1, L)             # 128-lane operands
    shift_l = jnp.tile(shift, L // C).reshape(1, L)

    # ---- pass 2: normalize + ReLU + residual, lane-dense (1, R, 128) blocks ----
    y_f = pl.pallas_call(
        _bn_relu_residual_kernel,
        out_shape=jax.ShapeDtypeStruct((N, R, L), jnp.float32),
        grid_spec=pltpu.PrefetchScalarGridSpec(
            num_scalar_prefetch=0,
            grid=(N,),
            in_specs=[
                pl.BlockSpec((1, R, L), lambda n: (n, 0, 0)),
                pl.BlockSpec((1, R, L), lambda n: (n, 0, 0)),
                pl.BlockSpec((1, L), lambda n: (0, 0)),
                pl.BlockSpec((1, L), lambda n: (0, 0)),
            ],
            out_specs=pl.BlockSpec((1, R, L), lambda n: (n, 0, 0)),
        ),
        compiler_params=pltpu.CompilerParams(
            dimension_semantics=("parallel",),
            vmem_limit_bytes=VMEM_LIMIT),
    )(x_f, conv, scale_l, shift_l)
    return y_f.reshape(N, H, W, C)


@jax.jit
def res_block_forward(x_nchw, params):
    """Pallas implementation of res_block.forward.  x_nchw: (N, C, H, W)."""
    # Single layout conversion at the block boundary (residual stream stays
    # in the folded NHWC layout between the two stages).
    x = jnp.transpose(x_nchw, (0, 2, 3, 1)).astype(jnp.float32)
    (w1, b1, g1, t1), (w2, b2, g2, t2) = params
    del b1, b2    # conv bias is algebraically cancelled by training-mode BatchNorm
    y = _stage(x, w1, g1, t1)        # y   = x + relu(bn(conv(x)))
    out = _stage(y, w2, g2, t2)      # out = y + relu(bn(conv1(y)))
    return jnp.transpose(out, (0, 3, 1, 2))


# ---------------- pure-JAX reference (NCHW, mirrors PyTorch, f32) ----------------
def _ref_stage(x, w_oihw, bias, gamma, beta):
    conv = lax.conv_general_dilated(
        x, w_oihw, window_strides=(1, 1), padding="SAME",
        dimension_numbers=("NCHW", "OIHW", "NCHW")) + bias[None, :, None, None]
    mean = conv.mean(axis=(0, 2, 3), keepdims=True)
    var = ((conv - mean) ** 2).mean(axis=(0, 2, 3), keepdims=True)
    bn = (conv - mean) / jnp.sqrt(var + EPS) * gamma[None, :, None, None] \
        + beta[None, :, None, None]
    return x + jnp.maximum(bn, 0.0)


def ref_forward(x, params):
    (w1, b1, g1, t1), (w2, b2, g2, t2) = params
    y = _ref_stage(x, w1, b1, g1, t1)
    return _ref_stage(y, w2, b2, g2, t2)


# ----------------------------- parameter init -------------------------------
def init_params(key, ch):
    keys = jax.random.split(key, 8)

    def one(kw, kb, kg, kt):
        w = 0.1 * jax.random.normal(kw, (ch, ch, 3, 3), jnp.float32)  # OIHW
        b = 0.1 * jax.random.normal(kb, (ch,), jnp.float32)
        g = 1.0 + 0.1 * jax.random.normal(kg, (ch,), jnp.float32)     # BN gamma
        t = 0.1 * jax.random.normal(kt, (ch,), jnp.float32)           # BN beta
        return (w, b, g, t)

    return (one(*keys[0:4]), one(*keys[4:8]))
    # TODO(synk): BatchNorm running-stat updates (a training-time side effect)
    # are not modeled; they do not affect the forward output.


if __name__ == "__main__":
    N, C, H, W = 2, 4, 16, 16
    key = jax.random.PRNGKey(0)
    kx, kp = jax.random.split(key)
    x = jax.random.normal(kx, (N, C, H, W), jnp.float32)
    params = init_params(kp, C)

    out = jax.block_until_ready(res_block_forward(x, params))
    ref = jax.block_until_ready(ref_forward(x, params))

    assert out.shape == (N, C, H, W), out.shape
    # Tolerance relaxed vs the f32 reference because the conv uses bf16 MXU
    # operands and the conv intermediate is stored in bf16 (f32 accumulation).
    max_err = float(jnp.max(jnp.abs(out - ref)))
    assert jnp.allclose(out, ref, atol=5e-2, rtol=5e-2), f"max_err={max_err}"
    print("KERNEL_OK")
</pallas_src>

<mosaic_0001>
module attributes {stable_mosaic.version = 11 : i64} {
  func.func @_conv_stats_kernel(%arg0: i32, %arg1: memref<1x8x128xf32, #tpu.memory_space<vmem>>, %arg2: memref<3x128x128xbf16, #tpu.memory_space<vmem>>, %arg3: memref<1x8x128xbf16, #tpu.memory_space<vmem>>, %arg4: memref<1x2x128xf32, #tpu.memory_space<vmem>>, %arg5: memref<10x128xf32, #tpu.memory_space<vmem>>) attributes {dimension_semantics = [#tpu.dimension_semantics<parallel>], iteration_bounds = array<i64: 2>, scalar_prefetch = 0 : i64, scratch_operands = 1 : i64, tpu.core_type = #tpu.core_type<tc>, window_params = [{transform_indices = @transform_0, window_bounds = array<i64: 1, 8, 128>}, {pipeline_mode = #tpu.pipeline_mode<synchronous>, transform_indices = @transform_1, window_bounds = array<i64: 3, 128, 128>}, {transform_indices = @transform_2, window_bounds = array<i64: 1, 8, 128>}, {transform_indices = @transform_3, window_bounds = array<i64: 1, 2, 128>}]} {
    %cst = arith.constant 0.000000e+00 : f32
    %0 = vector.broadcast %cst : f32 to vector<1x128xf32>
    %c0 = arith.constant 0 : index
    %c0_0 = arith.constant 0 : index
    %1 = vector.load %arg5[%c0, %c0_0] : memref<10x128xf32, #tpu.memory_space<vmem>>, vector<1x128xf32>
    tpu.vector_store %arg5[%c0, %c0_0], %0 {strides = array<i32>} : memref<10x128xf32, #tpu.memory_space<vmem>>, vector<1x128xf32>,
    %cst_1 = arith.constant 0.000000e+00 : f32
    %2 = vector.broadcast %cst_1 : f32 to vector<1x128xf32>
    %c9 = arith.constant 9 : index
    %c0_2 = arith.constant 0 : index
    %3 = vector.load %arg5[%c9, %c0_2] : memref<10x128xf32, #tpu.memory_space<vmem>>, vector<1x128xf32>
    tpu.vector_store %arg5[%c9, %c0_2], %2 {strides = array<i32>} : memref<10x128xf32, #tpu.memory_space<vmem>>, vector<1x128xf32>,
    %c0_3 = arith.constant 0 : index
    %c0_4 = arith.constant 0 : index
    %c0_5 = arith.constant 0 : index
    %4 = vector.load %arg1[%c0_3, %c0_4, %c0_5] : memref<1x8x128xf32, #tpu.memory_space<vmem>>, vector<1x8x128xf32>
    %5 = vector.shape_cast %4 : vector<1x8x128xf32> to vector<8x128xf32>
    %c1 = arith.constant 1 : index
    %c0_6 = arith.constant 0 : index
    %6 = vector.load %arg5[%c1, %c0_6] : memref<10x128xf32, #tpu.memory_space<vmem>>, vector<8x128xf32>
    tpu.vector_store %arg5[%c1, %c0_6], %5 {strides = array<i32>} : memref<10x128xf32, #tpu.memory_space<vmem>>, vector<8x128xf32>,
    %c0_7 = arith.constant 0 : index
    %c0_8 = arith.constant 0 : index
    %7 = vector.load %arg5[%c0_7, %c0_8] : memref<10x128xf32, #tpu.memory_space<vmem>>, vector<8x128xf32>
    %8 = arith.truncf %7 : vector<8x128xf32> to vector<8x128xbf16>
    %c0_9 = arith.constant 0 : index
    %c0_10 = arith.constant 0 : index
    %c0_11 = arith.constant 0 : index
    %9 = vector.load %arg2[%c0_9, %c0_10, %c0_11] : memref<3x128x128xbf16, #tpu.memory_space<vmem>>, vector<1x128x128xbf16>
    %10 = vector.shape_cast %9 : vector<1x128x128xbf16> to vector<128x128xbf16>
    %cst_12 = arith.constant dense<0.000000e+00> : vector<8x128xf32>
    %11 = tpu.matmul %8, %10, %cst_12 {dimension_numbers = #tpu.dot_dimension_numbers<[1], [0], [0], [1], [0, 0, 1, 1], [], []>} : vector<8x128xbf16>, vector<128x128xbf16>, vector<8x128xf32> -> vector<8x128xf32>
    %c1_13 = arith.constant 1 : index
    %c0_14 = arith.constant 0 : index
    %12 = vector.load %arg5[%c1_13, %c0_14] : memref<10x128xf32, #tpu.memory_space<vmem>>, vector<8x128xf32>
    %13 = arith.truncf %12 : vector<8x128xf32> to vector<8x128xbf16>
    %c1_15 = arith.constant 1 : index
    %c0_16 = arith.constant 0 : index
    %c0_17 = arith.constant 0 : index
    %14 = vector.load %arg2[%c1_15, %c0_16, %c0_17] : memref<3x128x128xbf16, #tpu.memory_space<vmem>>, vector<1x128x128xbf16>
    %15 = vector.shape_cast %14 : vector<1x128x128xbf16> to vector<128x128xbf16>
    %cst_18 = arith.constant dense<0.000000e+00> : vector<8x128xf32>
    %16 = tpu.matmul %13, %15, %cst_18 {dimension_numbers = #tpu.dot_dimension_numbers<[1], [0], [0], [1], [0, 0, 1, 1], [], []>} : vector<8x128xbf16>, vector<128x128xbf16>, vector<8x128xf32> -> vector<8x128xf32>
    %17 = arith.addf %11, %16 : vector<8x128xf32>
    %c2 = arith.constant 2 : index
    %c0_19 = arith.constant 0 : index
    %18 = vector.load %arg5[%c2, %c0_19] : memref<10x128xf32, #tpu.memory_space<vmem>>, vector<8x128xf32>
    %19 = arith.truncf %18 : vector<8x128xf32> to vector<8x128xbf16>
    %c2_20 = arith.constant 2 : index
    %c0_21 = arith.constant 0 : index
    %c0_22 = arith.constant 0 : index
    %20 = vector.load %arg2[%c2_20, %c0_21, %c0_22] : memref<3x128x128xbf16, #tpu.memory_space<vmem>>, vector<1x128x128xbf16>
    %21 = vector.shape_cast %20 : vector<1x128x128xbf16> to vector<128x128xbf16>
    %cst_23 = arith.constant dense<0.000000e+00> : vector<8x128xf32>
    %22 = tpu.matmul %19, %21, %cst_23 {dimension_numbers = #tpu.dot_dimension_numbers<[1], [0], [0], [1], [0, 0, 1, 1], [], []>} : vector<8x128xbf16>, vector<128x128xbf16>, vector<8x128xf32> -> vector<8x128xf32>
    %23 = arith.addf %17, %22 : vector<8x128xf32>
    %24 = arith.truncf %23 : vector<8x128xf32> to vector<8x128xbf16>
    %c0_24 = arith.constant 0 : index
    %c0_25 = arith.constant 0 : index
    %c0_26 = arith.constant 0 : index
    %25 = vector.load %arg3[%c0_24, %c0_25, %c0_26] : memref<1x8x128xbf16, #tpu.memory_space<vmem>>, vector<1x8x128xbf16>
    %26 = vector.shape_cast %25 : vector<1x8x128xbf16> to vector<8x128xbf16>
    %27 = vector.shape_cast %24 : vector<8x128xbf16> to vector<1x8x128xbf16>
    tpu.vector_store %arg3[%c0_24, %c0_25, %c0_26], %27 {strides = array<i32>} : memref<1x8x128xbf16, #tpu.memory_space<vmem>>, vector<1x8x128xbf16>,
    %cst_27 = arith.constant dense<0.000000e+00> : vector<128xf32>
    %28 = vector.multi_reduction <add>, %23, %cst_27 [0] : vector<8x128xf32> to vector<128xf32>
    %29 = vector.shape_cast %28 : vector<128xf32> to vector<1x128xf32>
    %cst_28 = arith.constant 1.250000e-01 : f32
    %30 = vector.broadcast %cst_28 : f32 to vector<1x128xf32>
    %31 = arith.mulf %29, %30 : vector<1x128xf32>
    %32 = vector.broadcast %31 : vector<1x128xf32> to vector<8x128xf32>
    %33 = arith.subf %23, %32 : vector<8x128xf32>
    %34 = arith.mulf %33, %33 : vector<8x128xf32>
    %cst_29 = arith.constant dense<0.000000e+00> : vector<128xf32>
    %35 = vector.multi_reduction <add>, %34, %cst_29 [0] : vector<8x128xf32> to vector<128xf32>
    %36 = vector.shape_cast %35 : vector<128xf32> to vector<1x128xf32>
    %37 = tpu.concatenate %29, %36 in 0 : vector<1x128xf32>, vector<1x128xf32> -> vector<2x128xf32>
    %c0_30 = arith.constant 0 : index
    %c0_31 = arith.constant 0 : index
    %c0_32 = arith.constant 0 : index
    %38 = vector.load %arg4[%c0_30, %c0_31, %c0_32] : memref<1x2x128xf32, #tpu.memory_space<vmem>>, vector<1x2x128xf32>
    %39 = vector.shape_cast %38 : vector<1x2x128xf32> to vector<2x128xf32>
    %40 = vector.shape_cast %37 : vector<2x128xf32> to vector<1x2x128xf32>
    tpu.vector_store %arg4[%c0_30, %c0_31, %c0_32], %40 {strides = array<i32>} : memref<1x2x128xf32, #tpu.memory_space<vmem>>, vector<1x2x128xf32>,
    return
  }
  func.func @transform_0(%arg0: i32) -> (i32, i32, i32) {
    %c0_i32 = arith.constant 0 : i32
    %c0_i32_0 = arith.constant 0 : i32
    %c0_i32_1 = arith.constant 0 : i32
    return %arg0, %c0_i32, %c0_i32_0 : i32, i32, i32
  }
  func.func @transform_1(%arg0: i32) -> (i32, i32, i32) {
    %c0_i32 = arith.constant 0 : i32
    %c0_i32_0 = arith.constant 0 : i32
    %c0_i32_1 = arith.constant 0 : i32
    %c0_i32_2 = arith.constant 0 : i32
    return %c0_i32, %c0_i32_0, %c0_i32_1 : i32, i32, i32
  }
  func.func @transform_2(%arg0: i32) -> (i32, i32, i32) {
    %c0_i32 = arith.constant 0 : i32
    %c0_i32_0 = arith.constant 0 : i32
    %c0_i32_1 = arith.constant 0 : i32
    return %arg0, %c0_i32, %c0_i32_0 : i32, i32, i32
  }
  func.func @transform_3(%arg0: i32) -> (i32, i32, i32) {
    %c0_i32 = arith.constant 0 : i32
    %c0_i32_0 = arith.constant 0 : i32
    %c0_i32_1 = arith.constant 0 : i32
    return %arg0, %c0_i32, %c0_i32_0 : i32, i32, i32
  }
}

module attributes {stable_mosaic.version = 11 : i64} {
  func.func @_bn_relu_residual_kernel(%arg0: i32, %arg1: memref<1x8x128xf32, #tpu.memory_space<vmem>>, %arg2: memref<1x8x128xbf16, #tpu.memory_space<vmem>>, %arg3: memref<1x128xf32, #tpu.memory_space<vmem>>, %arg4: memref<1x128xf32, #tpu.memory_space<vmem>>, %arg5: memref<1x8x128xf32, #tpu.memory_space<vmem>>) attributes {dimension_semantics = [#tpu.dimension_semantics<parallel>], iteration_bounds = array<i64: 2>, scalar_prefetch = 0 : i64, scratch_operands = 0 : i64, tpu.core_type = #tpu.core_type<tc>, window_params = [{transform_indices = @transform_0, window_bounds = array<i64: 1, 8, 128>}, {transform_indices = @transform_1, window_bounds = array<i64: 1, 8, 128>}, {pipeline_mode = #tpu.pipeline_mode<synchronous>, transform_indices = @transform_2, window_bounds = array<i64: 1, 128>}, {pipeline_mode = #tpu.pipeline_mode<synchronous>, transform_indices = @transform_3, window_bounds = array<i64: 1, 128>}, {transform_indices = @transform_4, window_bounds = array<i64: 1, 8, 128>}]} {
    %c0 = arith.constant 0 : index
    %c0_0 = arith.constant 0 : index
    %c0_1 = arith.constant 0 : index
    %0 = vector.load %arg2[%c0, %c0_0, %c0_1] : memref<1x8x128xbf16, #tpu.memory_space<vmem>>, vector<1x8x128xbf16>
    %1 = vector.shape_cast %0 : vector<1x8x128xbf16> to vector<8x128xbf16>
    %2 = arith.extf %1 : vector<8x128xbf16> to vector<8x128xf32>
    %c0_2 = arith.constant 0 : index
    %c0_3 = arith.constant 0 : index
    %3 = vector.load %arg3[%c0_2, %c0_3] : memref<1x128xf32, #tpu.memory_space<vmem>>, vector<1x128xf32>
    %4 = vector.broadcast %3 : vector<1x128xf32> to vector<8x128xf32>
    %5 = arith.mulf %2, %4 : vector<8x128xf32>
    %c0_4 = arith.constant 0 : index
    %c0_5 = arith.constant 0 : index
    %6 = vector.load %arg4[%c0_4, %c0_5] : memref<1x128xf32, #tpu.memory_space<vmem>>, vector<1x128xf32>
    %7 = vector.broadcast %6 : vector<1x128xf32> to vector<8x128xf32>
    %8 = arith.addf %5, %7 : vector<8x128xf32>
    %c0_6 = arith.constant 0 : index
    %c0_7 = arith.constant 0 : index
    %c0_8 = arith.constant 0 : index
    %9 = vector.load %arg1[%c0_6, %c0_7, %c0_8] : memref<1x8x128xf32, #tpu.memory_space<vmem>>, vector<1x8x128xf32>
    %10 = vector.shape_cast %9 : vector<1x8x128xf32> to vector<8x128xf32>
    %cst = arith.constant 0.000000e+00 : f32
    %11 = vector.broadcast %cst : f32 to vector<8x128xf32>
    %12 = arith.maximumf %8, %11 : vector<8x128xf32>
    %13 = arith.addf %10, %12 : vector<8x128xf32>
    %c0_9 = arith.constant 0 : index
    %c0_10 = arith.constant 0 : index
    %c0_11 = arith.constant 0 : index
    %14 = vector.load %arg5[%c0_9, %c0_10, %c0_11] : memref<1x8x128xf32, #tpu.memory_space<vmem>>, vector<1x8x128xf32>
    %15 = vector.shape_cast %14 : vector<1x8x128xf32> to vector<8x128xf32>
    %16 = vector.shape_cast %13 : vector<8x128xf32> to vector<1x8x128xf32>
    tpu.vector_store %arg5[%c0_9, %c0_10, %c0_11], %16 {strides = array<i32>} : memref<1x8x128xf32, #tpu.memory_space<vmem>>, vector<1x8x128xf32>,
    return
  }
  func.func @transform_0(%arg0: i32) -> (i32, i32, i32) {
    %c0_i32 = arith.constant 0 : i32
    %c0_i32_0 = arith.constant 0 : i32
    %c0_i32_1 = arith.constant 0 : i32
    return %arg0, %c0_i32, %c0_i32_0 : i32, i32, i32
  }
  func.func @transform_1(%arg0: i32) -> (i32, i32, i32) {
    %c0_i32 = arith.constant 0 : i32
    %c0_i32_0 = arith.constant 0 : i32
    %c0_i32_1 = arith.constant 0 : i32
    return %arg0, %c0_i32, %c0_i32_0 : i32, i32, i32
  }
  func.func @transform_2(%arg0: i32) -> (i32, i32) {
    %c0_i32 = arith.constant 0 : i32
    %c0_i32_0 = arith.constant 0 : i32
    %c0_i32_1 = arith.constant 0 : i32
    return %c0_i32, %c0_i32_0 : i32, i32
  }
  func.func @transform_3(%arg0: i32) -> (i32, i32) {
    %c0_i32 = arith.constant 0 : i32
    %c0_i32_0 = arith.constant 0 : i32
    %c0_i32_1 = arith.constant 0 : i32
    return %c0_i32, %c0_i32_0 : i32, i32
  }
  func.func @transform_4(%arg0: i32) -> (i32, i32, i32) {
    %c0_i32 = arith.constant 0 : i32
    %c0_i32_0 = arith.constant 0 : i32
    %c0_i32_1 = arith.constant 0 : i32
    return %arg0, %c0_i32, %c0_i32_0 : i32, i32, i32
  }
}

</mosaic_0001>

<llo_original>
// kernel: tile.23
$region0: #{tile.23}
  #allocation0 [shape = 's32[1]{0}', space=sflag, size = 0x4, scoped, tag = 'scoped memory for tile.23']
  %s0 = inlined_call_operand.vmem [shape: f32[4], index: 0, kind: input, shape index: {}]
  %s1 = inlined_call_operand.vmem [shape: f32[32,4], index: 1, kind: output, shape index: {}]
  // Predicated region
  $region2: #{tile.23} parent=0 // pred_check
    _
  $region3: #{tile.23} parent=0 // pred_check_branch
    %3 = sbr.rel (0) target = $region5
  $region4: #{tile.23} parent=0 // pred_region
    _
  $region5: #{tile.23} parent=0 // pred_fallthru
    _
  %v4 = vld [vmem:[%s0] ss:$0 sm:$0xff]
  %5 = vst [vmem:[%s1] sm:$0xff] %v4
  %s6 = scalar_lea.vmem %s1, 8
  %7 = vst [vmem:[%s6] sm:$0xff] %v4
  %s8 = scalar_lea.vmem %s1, 16
  %9 = vst [vmem:[%s8] sm:$0xff] %v4
  %s10 = scalar_lea.vmem %s1, 24
  %11 = vst [vmem:[%s10] sm:$0xff] %v4

// kernel: tile.24
$region0: #{tile.24}
  %s0 = inlined_call_operand.vmem [shape: f32[32,4], index: 0, kind: input, shape index: {}]
  %s1 = inlined_call_operand.vmem [shape: f32[1,128], index: 1, kind: output, shape index: {}]
  $region1: #{tile.24} parent=0
    #allocation0 [shape = 'u8[4096]{0}', space=vmem, size = 0x1000, scoped, tag = 'scoped mem for output reshape']
    %v2 = vld [vmem:[%s0] sm:$0x1]
    %vm3 = vcmask 31744
    %4 = vst.msk [vmem:[#allocation0] sm:$0x1] %vm3, %v2
    %s5 = scalar_lea.vmem %s0, 31
    %v6 = vld [vmem:[%s5] sm:$0x1]
    %7 = vrot.lane.b32.xlu0 %v6, 124
    %v8 = vpop.permute.xlu0 %7
    %vm9 = vcmask 1048544
    %10 = vst.msk [vmem:[#allocation0] sm:$0x1] %vm9, %v8
    %s11 = scalar_lea.vmem %s0, 30
    %v12 = vld [vmem:[%s11] sm:$0x1]
    %13 = vrot.lane.b32.xlu0 %v12, 120
    %v14 = vpop.permute.xlu0 %13
    %vm15 = vcmask 1015744
    %16 = vst.msk [vmem:[#allocation0] sm:$0x1] %vm15, %v14
    %s17 = scalar_lea.vmem %s0, 29
    %v18 = vld [vmem:[%s17] sm:$0x1]
    %19 = vrot.lane.b32.xlu0 %v18, 116
    %v20 = vpop.permute.xlu0 %19
    %vm21 = vcmask 982944
    %22 = vst.msk [vmem:[#allocation0] sm:$0x1] %vm21, %v20
    %s23 = scalar_lea.vmem %s0, 28
    %v24 = vld [vmem:[%s23] sm:$0x1]
    %25 = vrot.lane.b32.xlu0 %v24, 112
    %v26 = vpop.permute.xlu0 %25
    %vm27 = vcmask 950144
    %28 = vst.msk [vmem:[#allocation0] sm:$0x1] %vm27, %v26
    %s29 = scalar_lea.vmem %s0, 27
    %v30 = vld [vmem:[%s29] sm:$0x1]
    %31 = vrot.lane.b32.xlu0 %v30, 108
    %v32 = vpop.permute.xlu0 %31
    %vm33 = vcmask 917344
    %34 = vst.msk [vmem:[#allocation0] sm:$0x1] %vm33, %v32
    %s35 = scalar_lea.vmem %s0, 26
    %v36 = vld [vmem:[%s35] sm:$0x1]
    %37 = vrot.lane.b32.xlu0 %v36, 104
    %v38 = vpop.permute.xlu0 %37
    %vm39 = vcmask 884544
    %40 = vst.msk [vmem:[#allocation0] sm:$0x1] %vm39, %v38
    %s41 = scalar_lea.vmem %s0, 25
    %v42 = vld [vmem:[%s41] sm:$0x1]
    %43 = vrot.lane.b32.xlu0 %v42, 100
    %v44 = vpop.permute.xlu0 %43
    %vm45 = vcmask 851744
    %46 = vst.msk [vmem:[#allocation0] sm:$0x1] %vm45, %v44
    %s47 = scalar_lea.vmem %s0, 24
    %v48 = vld [vmem:[%s47] sm:$0x1]
    %49 = vrot.lane.b32.xlu0 %v48, 96
    %v50 = vpop.permute.xlu0 %49
    %vm51 = vcmask 818944
    %52 = vst.msk [vmem:[#allocation0] sm:$0x1] %vm51, %v50
    %s53 = scalar_lea.vmem %s0, 23
    %v54 = vld [vmem:[%s53] sm:$0x1]
    %55 = vrot.lane.b32.xlu0 %v54, 92
    %v56 = vpop.permute.xlu0 %55
    %vm57 = vcmask 786144
    %58 = vst.msk [vmem:[#allocation0] sm:$0x1] %vm57, %v56
    %s59 = scalar_lea.vmem %s0, 22
    %v60 = vld [vmem:[%s59] sm:$0x1]
    %61 = vrot.lane.b32.xlu0 %v60, 88
    %v62 = vpop.permute.xlu0 %61
    %vm63 = vcmask 753344
    %64 = vst.msk [vmem:[#allocation0] sm:$0x1] %vm63, %v62
    %s65 = scalar_lea.vmem %s0, 21
    %v66 = vld [vmem:[%s65] sm:$0x1]
    %67 = vrot.lane.b32.xlu0 %v66, 84
    %v68 = vpop.permute.xlu0 %67
    %vm69 = vcmask 720544
    %70 = vst.msk [vmem:[#allocation0] sm:$0x1] %vm69, %v68
    %s71 = scalar_lea.vmem %s0, 20
    %v72 = vld [vmem:[%s71] sm:$0x1]
    %73 = vrot.lane.b32.xlu0 %v72, 80
    %v74 = vpop.permute.xlu0 %73
    %vm75 = vcmask 687744
    %76 = vst.msk [vmem:[#allocation0] sm:$0x1] %vm75, %v74
    %s77 = scalar_lea.vmem %s0, 19
    %v78 = vld [vmem:[%s77] sm:$0x1]
    %79 = vrot.lane.b32.xlu0 %v78, 76
    %v80 = vpop.permute.xlu0 %79
    %vm81 = vcmask 654944
    %82 = vst.msk [vmem:[#allocation0] sm:$0x1] %vm81, %v80
    %s83 = scalar_lea.vmem %s0, 18
    %v84 = vld [vmem:[%s83] sm:$0x1]
    %85 = vrot.lane.b32.xlu0 %v84, 72
    %v86 = vpop.permute.xlu0 %85
    %vm87 = vcmask 622144
    %88 = vst.msk [vmem:[#allocation0] sm:$0x1] %vm87, %v86
    %s89 = scalar_lea.vmem %s0, 17
    %v90 = vld [vmem:[%s89] sm:$0x1]
    %91 = vrot.lane.b32.xlu0 %v90, 68
    %v92 = vpop.permute.xlu0 %91
    %vm93 = vcmask 589344
    %94 = vst.msk [vmem:[#allocation0] sm:$0x1] %vm93, %v92
    %s95 = scalar_lea.vmem %s0, 16
    %v96 = vld [vmem:[%s95] sm:$0x1]
    %97 = vrot.lane.b32.xlu0 %v96, 64
    %v98 = vpop.permute.xlu0 %97
    %vm99 = vcmask 556544
    %100 = vst.msk [vmem:[#allocation0] sm:$0x1] %vm99, %v98
    %s101 = scalar_lea.vmem %s0, 15
    %v102 = vld [vmem:[%s101] sm:$0x1]
    %103 = vrot.lane.b32.xlu0 %v102, 60
    %v104 = vpop.permute.xlu0 %103
    %vm105 = vcmask 523744
    %106 = vst.msk [vmem:[#allocation0] sm:$0x1] %vm105, %v104
    %s107 = scalar_lea.vmem %s0, 14
    %v108 = vld [vmem:[%s107] sm:$0x1]
    %109 = vrot.lane.b32.xlu0 %v108, 56
    %v110 = vpop.permute.xlu0 %109
    %vm111 = vcmask 490944
    %112 = vst.msk [vmem:[#allocation0] sm:$0x1] %vm111, %v110
    %s113 = scalar_lea.vmem %s0, 13
    %v114 = vld [vmem:[%s113] sm:$0x1]
    %115 = vrot.lane.b32.xlu0 %v114, 52
    %v116 = vpop.permute.xlu0 %115
    %vm117 = vcmask 458144
    %118 = vst.msk [vmem:[#allocation0] sm:$0x1] %vm117, %v116
    %s119 = scalar_lea.vmem %s0, 12
    %v120 = vld [vmem:[%s119] sm:$0x1]
    %121 = vrot.lane.b32.xlu0 %v120, 48
    %v122 = vpop.permute.xlu0 %121
    %vm123 = vcmask 425344
    %124 = vst.msk [vmem:[#allocation0] sm:$0x1] %vm123, %v122
    %s125 = scalar_lea.vmem %s0, 11
    %v126 = vld [vmem:[%s125] sm:$0x1]
    %127 = vrot.lane.b32.xlu0 %v126, 44
    %v128 = vpop.permute.xlu0 %127
    %vm129 = vcmask 392544
    %130 = vst.msk [vmem:[#allocation0] sm:$0x1] %vm129, %v128
    %s131 = scalar_lea.vmem %s0, 10
    %v132 = vld [vmem:[%s131] sm:$0x1]
    %133 = vrot.lane.b32.xlu0 %v132, 40
    %v134 = vpop.permute.xlu0 %133
    %vm135 = vcmask 359744
    %136 = vst.msk [vmem:[#allocation0] sm:$0x1] %vm135, %v134
    %s137 = scalar_lea.vmem %s0, 9
    %v138 = vld [vmem:[%s137] sm:$0x1]
    %139 = vrot.lane.b32.xlu0 %v138, 36
    %v140 = vpop.permute.xlu0 %139
    %vm141 = vcmask 326944
    %142 = vst.msk [vmem:[#allocation0] sm:$0x1] %vm141, %v140
    %s143 = scalar_lea.vmem %s0, 8
    %v144 = vld [vmem:[%s143] sm:$0x1]
    %145 = vrot.lane.b32.xlu0 %v144, 32
    %v146 = vpop.permute.xlu0 %145
    %vm147 = vcmask 294144
    %148 = vst.msk [vmem:[#allocation0] sm:$0x1] %vm147, %v146
    %s149 = scalar_lea.vmem %s0, 7
    %v150 = vld [vmem:[%s149] sm:$0x1]
    %151 = vrot.lane.b32.xlu0 %v150, 28
    %v152 = vpop.permute.xlu0 %151
    %vm153 = vcmask 261344
    %154 = vst.msk [vmem:[#allocation0] sm:$0x1] %vm153, %v152
    %s155 = scalar_lea.vmem %s0, 6
    %v156 = vld [vmem:[%s155] sm:$0x1]
    %157 = vrot.lane.b32.xlu0 %v156, 24
    %v158 = vpop.permute.xlu0 %157
    %vm159 = vcmask 228544
    %160 = vst.msk [vmem:[#allocation0] sm:$0x1] %vm159, %v158
    %s161 = scalar_lea.vmem %s0, 5
    %v162 = vld [vmem:[%s161] sm:$0x1]
    %163 = vrot.lane.b32.xlu0 %v162, 20
    %v164 = vpop.permute.xlu0 %163
    %vm165 = vcmask 195744
    %166 = vst.msk [vmem:[#allocation0] sm:$0x1] %vm165, %v164
    %s167 = scalar_lea.vmem %s0, 4
    %v168 = vld [vmem:[%s167] sm:$0x1]
    %169 = vrot.lane.b32.xlu0 %v168, 16
    %v170 = vpop.permute.xlu0 %169
    %vm171 = vcmask 162944
    %172 = vst.msk [vmem:[#allocation0] sm:$0x1] %vm171, %v170
    %s173 = scalar_lea.vmem %s0, 3
    %v174 = vld [vmem:[%s173] sm:$0x1]
    %175 = vrot.lane.b32.xlu0 %v174, 12
    %v176 = vpop.permute.xlu0 %175
    %vm177 = vcmask 130144
    %178 = vst.msk [vmem:[#allocation0] sm:$0x1] %vm177, %v176
    %s179 = scalar_lea.vmem %s0, 2
    %v180 = vld [vmem:[%s179] sm:$0x1]
    %181 = vrot.lane.b32.xlu0 %v180, 8
    %v182 = vpop.permute.xlu0 %181
    %vm183 = vcmask 97344
    %184 = vst.msk [vmem:[#allocation0] sm:$0x1] %vm183, %v182
    %s185 = scalar_lea.vmem %s0, 1
    %v186 = vld [vmem:[%s185] sm:$0x1]
    %187 = vrot.lane.b32.xlu0 %v186, 4
    %v188 = vpop.permute.xlu0 %187
    %vm189 = vcmask 64544
    %190 = vst.msk [vmem:[#allocation0] sm:$0x1] %vm189, %v188
    %s192 = sshll.u32 1, 1
    %s193 = ssub.s32 %s192, 1
    %v195 = vld [vmem:[#allocation0] sm:%s193]
    %s196 = sshll.u32 1, 1
    %s197 = ssub.s32 %s196, 1
    %198 = vst [vmem:[%s1] sm:%s197] %v195

// kernel: res_block_forward.4
$region0: #{res_block_forward.4}
  #allocation0 [shape = 'u32[]', space=smem, size = 0x4, offset = 0x4, fixed_abs, tag = 'smem constant byte address 0x4 - core index']
  #allocation1 [shape = 'u32[144,128]{1,0:T(1,128)}', space=vmem, size = 0x12000, scoped, tag = 'internal scratch']
  #allocation2 [shape = 'f32[10,128]{1,0:T(8,128)}', space=vmem, size = 0x2000, scoped, tag = 'scratch operand']
  %s0 = inlined_call_operand.vmem [shape: f32[2,8,128], index: 0, kind: input, shape index: {}]
  %s1 = inlined_call_operand.vmem [shape: bf16[3,128,128], index: 1, kind: input, shape index: {}]
  %s2 = inlined_call_operand.vmem [shape: bf16[2,8,128], index: 2, kind: output, shape index: {0}]
  %s3 = inlined_call_operand.vmem [shape: f32[2,2,128], index: 3, kind: output, shape index: {1}]
  %4 = xla_tuple %s2, %s3
  %s5 = sld [smem:[#allocation0]]
  $region49: #{res_block_forward.4} parent=0
    _
  %s7 = ssub.s32 1, %s5
  %s8 = scalar_select 0, %s7, %s5
  loop: start=0, step=1, limit=4
  $region2: #{res_block_forward.4} parent=0 // loop_pre_header
    _
  $region3: #{res_block_forward.4} parent=0 // loop_header
    %s10 = sphi 0, %s14
    %p11 = scmp.ge.s32.totalorder %s10, 4
    %s20 = sphi 0, %s22
    %s23 = sphi 0, %s20
    %s24 = sphi 0, %s23
    %s40 = sphi 0, %s24
    %s44 = sphi 0, %s44
    %s46 = sphi 0, %s44
    %s47 = sphi 0, %s46
    %s61 = sphi 0, %s47
    %s67 = sphi 0, %s69
    %s70 = sphi 0, %s67
    %s71 = sphi 0, %s70
    %s87 = sphi 0, %s71
    %s93 = sphi 0, %s95
    %s96 = sphi 0, %s93
    %s97 = sphi 0, %s96
    %s113 = sphi 0, %s97
  $region4: #{res_block_forward.4} parent=0 // loop_header_branch
    %13 = sbr.rel (%p11) target = $region8
  $region5: #{res_block_forward.4} parent=0 // loop_body
    %s15 = ssub.s32 %s10, 1
    %s16 = ssub.s32 %s10, 2
    %s17 = sadd.s32 %s10, 1
    %s18 = ssub.s32 %s10, %s17
    %p19 = scmp.eq.s32.totalorder %s18, 0
    %s21 = sadd.s32 %s20, 1
    %s22 = scalar_select %p19, %s20, %s21
    %p25 = pneg %p19
    %p26 = scmp.eq.s32.totalorder %s10, 1
    %p27 = por %p25, %p26
    %p28 = scmp.ne.s32.totalorder %s20, %s23
    %p29 = scmp.eq.s32.totalorder %s10, 0
    %p30 = por %p28, %p29
    %p31 = scmp.ne.s32.totalorder %s20, %s23
    %p32 = scmp.eq.s32.totalorder %s15, 1
    %p33 = por %p31, %p32
    %p34 = scmp.ne.s32.totalorder %s23, %s24
    %p35 = scmp.eq.s32.totalorder %s15, 0
    %p36 = por %p34, %p35
    %p37 = scmp.ne.s32.totalorder %s23, %s24
    %p38 = scmp.eq.s32.totalorder %s16, 1
    %p39 = por %p37, %p38
    %p41 = scmp.ne.s32.totalorder %s24, %s40
    %p42 = scmp.eq.s32.totalorder %s16, 0
    %p43 = por %p41, %p42
    %s45 = sadd.s32 %s44, 1
    %p48 = scmp.eq.s32.totalorder %s10, 1
    %p49 = scmp.ne.s32.totalorder %s44, %s46
    %p50 = scmp.eq.s32.totalorder %s10, 0
    %p51 = por %p49, %p50
    %p52 = scmp.ne.s32.totalorder %s44, %s46
    %p53 = scmp.eq.s32.totalorder %s15, 1
    %p54 = por %p52, %p53
    %p55 = scmp.ne.s32.totalorder %s46, %s47
    %p56 = scmp.eq.s32.totalorder %s15, 0
    %p57 = por %p55, %p56
    %p58 = scmp.ne.s32.totalorder %s46, %s47
    %p59 = scmp.eq.s32.totalorder %s16, 1
    %p60 = por %p58, %p59
    %p62 = scmp.ne.s32.totalorder %s47, %s61
    %p63 = scmp.eq.s32.totalorder %s16, 0
    %p64 = por %p62, %p63
    %s65 = ssub.s32 %s10, %s17
    %p66 = scmp.eq.s32.totalorder %s65, 0
    %s68 = sadd.s32 %s67, 1
    %s69 = scalar_select %p66, %s67, %s68
    %p72 = pneg %p66
    %p73 = scmp.eq.s32.totalorder %s10, 1
    %p74 = por %p72, %p73
    %p75 = scmp.ne.s32.totalorder %s67, %s70
    %p76 = scmp.eq.s32.totalorder %s10, 0
    %p77 = por %p75, %p76
    %p78 = scmp.ne.s32.totalorder %s67, %s70
    %p79 = scmp.eq.s32.totalorder %s15, 1
    %p80 = por %p78, %p79
    %p81 = scmp.ne.s32.totalorder %s70, %s71
    %p82 = scmp.eq.s32.totalorder %s15, 0
    %p83 = por %p81, %p82
    %p84 = scmp.ne.s32.totalorder %s70, %s71
    %p85 = scmp.eq.s32.totalorder %s16, 1
    %p86 = por %p84, %p85
    %p88 = scmp.ne.s32.totalorder %s71, %s87
    %p89 = scmp.eq.s32.totalorder %s16, 0
    %p90 = por %p88, %p89
    %s91 = ssub.s32 %s10, %s17
    %p92 = scmp.eq.s32.totalorder %s91, 0
    %s94 = sadd.s32 %s93, 1
    %s95 = scalar_select %p92, %s93, %s94
    %p98 = pneg %p92
    %p99 = scmp.eq.s32.totalorder %s10, 1
    %p100 = por %p98, %p99
    %p101 = scmp.ne.s32.totalorder %s93, %s96
    %p102 = scmp.eq.s32.totalorder %s10, 0
    %p103 = por %p101, %p102
    %p104 = scmp.ne.s32.totalorder %s93, %s96
    %p105 = scmp.eq.s32.totalorder %s15, 1
    %p106 = por %p104, %p105
    %p107 = scmp.ne.s32.totalorder %s96, %s97
    %p108 = scmp.eq.s32.totalorder %s15, 0
    %p109 = por %p107, %p108
    %p110 = scmp.ne.s32.totalorder %s96, %s97
    %p111 = scmp.eq.s32.totalorder %s16, 1
    %p112 = por %p110, %p111
    %p114 = scmp.ne.s32.totalorder %s97, %s113
    %p115 = scmp.eq.s32.totalorder %s16, 0
    %p116 = por %p114, %p115
    %p117 = scmp.le.s32.totalorder 1, %s10
    %p118 = scmp.lt.s32.totalorder %s10, 3
    %p119 = pnand %p117, %p118
    %p120 = pneg %p119
    // Predicated region
    $region9: #{res_block_forward.4} parent=5 // pred_check
      _
    $region10: #{res_block_forward.4} parent=5 // pred_check_branch
      %122 = sbr.rel (%p119) target = $region12
    $region11: #{res_block_forward.4} parent=5 // pred_region
      %s123 = ssub.s32 %s10, 1
      // Predicated region
      $region13: #{res_block_forward.4} parent=11 // pred_check
        %p124 = pneg %p57
      $region14: #{res_block_forward.4} parent=11 // pred_check_branch
        %126 = sbr.rel (%p124) target = $region16
      $region15: #{res_block_forward.4} parent=11 // pred_region
        _
      $region16: #{res_block_forward.4} parent=11 // pred_fallthru
        _
    $region12: #{res_block_forward.4} parent=5 // pred_fallthru
      _
    %p127 = scmp.lt.s32.totalorder %s10, 2
    // Predicated region
    $region17: #{res_block_forward.4} parent=5 // pred_check
      %p128 = pneg %p127
    $region18: #{res_block_forward.4} parent=5 // pred_check_branch
      %130 = sbr.rel (%p128) target = $region20
    $region19: #{res_block_forward.4} parent=5 // pred_region
      // Predicated region
      $region21: #{res_block_forward.4} parent=19 // pred_check
        %p131 = pneg %p30
      $region22: #{res_block_forward.4} parent=19 // pred_check_branch
        %133 = sbr.rel (%p131) target = $region24
      $region23: #{res_block_forward.4} parent=19 // pred_region
        %p134 = scmp.lt.s32.totalorder %s10, 1
        %s135 = scalar_select %p134, %s10, 1
        %s136 = smul.addr %s135, 8
        %s137 = scalar_lea.vmem %s0, %s136
      $region24: #{res_block_forward.4} parent=19 // pred_fallthru
        _
    $region20: #{res_block_forward.4} parent=5 // pred_fallthru
      _
    %p138 = scmp.le.s32.totalorder 1, %s10
    %p139 = scmp.lt.s32.totalorder %s10, 3
    %p140 = pnand %p138, %p139
    %p141 = pneg %p140
    // Predicated region
    $region25: #{res_block_forward.4} parent=5 // pred_check
      _
    $region26: #{res_block_forward.4} parent=5 // pred_check_branch
      %143 = sbr.rel (%p140) target = $region28
    $region27: #{res_block_forward.4} parent=5 // pred_region
      %s144 = ssub.s32 %s10, 1
      %p145 = scmp.lt.s32.totalorder %s15, 1
      %s146 = scalar_select %p145, %s15, 1
      %s147 = smul.addr %s146, 8
      %s148 = scalar_lea.vmem %s0, %s147
      %p149 = pneg %p36
      %p150 = pneg %p33
      %p151 = pneg %p57
      %p152 = pneg %p54
      %p153 = pneg %p83
      %p154 = pneg %p80
      %p155 = scmp.lt.s32.totalorder %s15, 1
      %s156 = scalar_select %p155, %s15, 1
      %s157 = smul.addr %s156, 4
      %s158 = scalar_lea.vmem %s2, %s157
      %p159 = pneg %p109
      %p160 = pneg %p106
      %p161 = scmp.lt.s32.totalorder %s15, 1
      %s162 = scalar_select %p161, %s15, 1
      %s163 = smul.addr %s162, 2
      %s164 = scalar_lea.vmem %s3, %s163
      %p165 = scmp.lt.s32.totalorder %s15, 1
      %s166 = scalar_select %p165, %s15, 1
      %s167 = smul.addr %s166, 8
      %s168 = scalar_lea.vmem %s0, %s167
      %p169 = scmp.lt.s32.totalorder %s15, 1
      %s170 = scalar_select %p169, %s15, 1
      %s171 = smul.addr %s170, 4
      %s172 = scalar_lea.vmem %s2, %s171
      %p173 = scmp.lt.s32.totalorder %s15, 1
      %s174 = scalar_select %p173, %s15, 1
      %s175 = smul.addr %s174, 2
      %s176 = scalar_lea.vmem %s3, %s175
      %178 = vst [vmem:[#allocation2] sm:$0x1] 0.0
      %179 = vst [vmem:[#allocation2 + $0x9] sm:$0x1] 0.0
      %v180 = vld [vmem:[%s168] sm:$0xff]
      %181 = vst [vmem:[#allocation2 + $0x1] sm:$0xff] %v180
      %v182 = vld [vmem:[#allocation2] sm:$0xff]
      %v183 = vpack.c.bf16 %v182, %v182
      %v184 = vld [vmem:[%s1] sm:$0xf]
      %v185 = vld [vmem:[%s1 + $0x4] sm:$0xf]
      %v186 = vld [vmem:[%s1 + $0x8] sm:$0xf]
      %v187 = vld [vmem:[%s1 + $0xc] sm:$0xf]
      %v188 = vld [vmem:[%s1 + $0x10] sm:$0xf]
      %v189 = vld [vmem:[%s1 + $0x14] sm:$0xf]
      %v190 = vld [vmem:[%s1 + $0x18] sm:$0xf]
      %v191 = vld [vmem:[%s1 + $0x1c] sm:$0xf]
      %v192 = vld [vmem:[%s1 + $0x20] sm:$0xf]
      %v193 = vld [vmem:[%s1 + $0x24] sm:$0xf]
      %v194 = vld [vmem:[%s1 + $0x28] sm:$0xf]
      %v195 = vld [vmem:[%s1 + $0x2c] sm:$0xf]
      %v196 = vld [vmem:[%s1 + $0x30] sm:$0xf]
      %v197 = vld [vmem:[%s1 + $0x34] sm:$0xf]
      %v198 = vld [vmem:[%s1 + $0x38] sm:$0xf]
      %v199 = vld [vmem:[%s1 + $0x3c] sm:$0xf]
      %v200 = vld [vmem:[#allocation2 + $0x1] sm:$0xff]
      %v201 = vpack.c.bf16 %v200, %v200
      %s202 = scalar_lea.vmem %s1, 64
      %v203 = vld [vmem:[%s202] sm:$0xf]
      %v204 = vld [vmem:[%s202 + $0x4] sm:$0xf]
      %v205 = vld [vmem:[%s202 + $0x8] sm:$0xf]
      %v206 = vld [vmem:[%s202 + $0xc] sm:$0xf]
      %v207 = vld [vmem:[%s202 + $0x10] sm:$0xf]
      %v208 = vld [vmem:[%s202 + $0x14] sm:$0xf]
      %v209 = vld [vmem:[%s202 + $0x18] sm:$0xf]
      %v210 = vld [vmem:[%s202 + $0x1c] sm:$0xf]
      %v211 = vld [vmem:[%s202 + $0x20] sm:$0xf]
      %v212 = vld [vmem:[%s202 + $0x24] sm:$0xf]
      %v213 = vld [vmem:[%s202 + $0x28] sm:$0xf]
      %v214 = vld [vmem:[%s202 + $0x2c] sm:$0xf]
      %v215 = vld [vmem:[%s202 + $0x30] sm:$0xf]
      %v216 = vld [vmem:[%s202 + $0x34] sm:$0xf]
      %v217 = vld [vmem:[%s202 + $0x38] sm:$0xf]
      %v218 = vld [vmem:[%s202 + $0x3c] sm:$0xf]
      %v235 = vunpack.c.l.b16 %v203
      %v236 = vunpack.c.l.b16 %v204
      %v237 = vunpack.c.l.b16 %v205
      %v238 = vunpack.c.l.b16 %v206
      %v239 = vunpack.c.l.b16 %v207
      %v240 = vunpack.c.l.b16 %v208
      %v241 = vunpack.c.l.b16 %v209
      %v242 = vunpack.c.l.b16 %v210
      %v243 = vunpack.c.l.b16 %v211
      %v244 = vunpack.c.l.b16 %v212
      %v245 = vunpack.c.l.b16 %v213
      %v246 = vunpack.c.l.b16 %v214
      %v247 = vunpack.c.l.b16 %v215
      %v248 = vunpack.c.l.b16 %v216
      %v249 = vunpack.c.l.b16 %v217
      %v250 = vunpack.c.l.b16 %v218
      %v251 = vpack.c.b16 %v236, %v235
      %v252 = vpack.c.b16 %v238, %v237
      %v253 = vpack.c.b16 %v240, %v239
      %v254 = vpack.c.b16 %v242, %v241
      %v255 = vpack.c.b16 %v244, %v243
      %v256 = vpack.c.b16 %v246, %v245
      %v257 = vpack.c.b16 %v248, %v247
      %v258 = vpack.c.b16 %v250, %v249
      %267 = vmatprep.subr.bf16.mxu0 0
      %268 = vmatpush1.bf16.msra.mxu0 %v258
      %269 = vmatprep.subr.bf16.mxu0 0
      %270 = vmatpush1.bf16.msra.mxu0 %v257
      %271 = vmatprep.subr.bf16.mxu0 0
      %272 = vmatpush1.bf16.msra.mxu0 %v256
      %273 = vmatprep.subr.bf16.mxu0 0
      %274 = vmatpush1.bf16.msra.mxu0 %v255
      %275 = vmatprep.subr.bf16.mxu0 0
      %276 = vmatpush1.bf16.msra.mxu0 %v254
      %277 = vmatprep.subr.bf16.mxu0 0
      %278 = vmatpush1.bf16.msra.mxu0 %v253
      %279 = vmatprep.subr.bf16.mxu0 0
      %280 = vmatpush1.bf16.msra.mxu0 %v252
      %281 = vmatprep.subr.bf16.mxu0 0
      %282 = vmatpush1.bf16.msra.mxu0 %v251
      %283 = vmatprep.subr.bf16.mxu0 0
      %284 = vmatpush2.bf16.msra.mxu0 0
      %285 = vmatprep.subr.bf16.mxu0 0
      %286 = vmatpush2.bf16.msra.mxu0 0
      %287 = vmatprep.subr.bf16.mxu0 0
      %288 = vmatpush2.bf16.msra.mxu0 0
      %289 = vmatprep.subr.bf16.mxu0 0
      %290 = vmatpush2.bf16.msra.mxu0 0
      %291 = vmatprep.subr.bf16.mxu0 0
      %292 = vmatpush2.bf16.msra.mxu0 0
      %293 = vmatprep.subr.bf16.mxu0 0
      %294 = vmatpush2.bf16.msra.mxu0 0
      %295 = vmatprep.subr.bf16.mxu0 0
      %296 = vmatpush2.bf16.msra.mxu0 0
      %297 = vmatprep.subr.bf16.mxu0 0
      %298 = vmatpush2.bf16.msra.mxu0 0
      %299 = vmatprep.mubr.bf16.mxu0 0
      %300 = vmatmul.mubr.bf16.gmra.mxu0 %v201
      %v301 = vpop.f32.mrf.mxu0
      %v302 = vadd.f32 0.0, %v301
      %v303 = vpop.f32.mrf.mxu0
      %v304 = vpop.f32.mrf.mxu0
      %v305 = vpop.f32.mrf.mxu0
      %306 = vdwg.mxu0
      %v323 = vunpack.c.l.b16 %v184
      %v324 = vunpack.c.l.b16 %v185
      %v325 = vunpack.c.l.b16 %v186
      %v326 = vunpack.c.l.b16 %v187
      %v327 = vunpack.c.l.b16 %v188
      %v328 = vunpack.c.l.b16 %v189
      %v329 = vunpack.c.l.b16 %v190
      %v330 = vunpack.c.l.b16 %v191
      %v331 = vunpack.c.l.b16 %v192
      %v332 = vunpack.c.l.b16 %v193
      %v333 = vunpack.c.l.b16 %v194
      %v334 = vunpack.c.l.b16 %v195
      %v335 = vunpack.c.l.b16 %v196
      %v336 = vunpack.c.l.b16 %v197
      %v337 = vunpack.c.l.b16 %v198
      %v338 = vunpack.c.l.b16 %v199
      %v339 = vpack.c.b16 %v324, %v323
      %v340 = vpack.c.b16 %v326, %v325
      %v341 = vpack.c.b16 %v328, %v327
      %v342 = vpack.c.b16 %v330, %v329
      %v343 = vpack.c.b16 %v332, %v331
      %v344 = vpack.c.b16 %v334, %v333
      %v345 = vpack.c.b16 %v336, %v335
      %v346 = vpack.c.b16 %v338, %v337
      %355 = vmatprep.subr.bf16.mxu0 0
      %356 = vmatpush1.bf16.msra.mxu0 %v346
      %357 = vmatprep.subr.bf16.mxu0 0
      %358 = vmatpush1.bf16.msra.mxu0 %v345
      %359 = vmatprep.subr.bf16.mxu0 0
      %360 = vmatpush1.bf16.msra.mxu0 %v344
      %361 = vmatprep.subr.bf16.mxu0 0
      %362 = vmatpush1.bf16.msra.mxu0 %v343
      %363 = vmatprep.subr.bf16.mxu0 0
      %364 = vmatpush1.bf16.msra.mxu0 %v342
      %365 = vmatprep.subr.bf16.mxu0 0
      %366 = vmatpush1.bf16.msra.mxu0 %v341
      %367 = vmatprep.subr.bf16.mxu0 0
      %368 = vmatpush1.bf16.msra.mxu0 %v340
      %369 = vmatprep.subr.bf16.mxu0 0
      %370 = vmatpush1.bf16.msra.mxu0 %v339
      %371 = vmatprep.subr.bf16.mxu0 0
      %372 = vmatpush2.bf16.msra.mxu0 0
      %373 = vmatprep.subr.bf16.mxu0 0
      %374 = vmatpush2.bf16.msra.mxu0 0
      %375 = vmatprep.subr.bf16.mxu0 0
      %376 = vmatpush2.bf16.msra.mxu0 0
      %377 = vmatprep.subr.bf16.mxu0 0
      %378 = vmatpush2.bf16.msra.mxu0 0
      %379 = vmatprep.subr.bf16.mxu0 0
      %380 = vmatpush2.bf16.msra.mxu0 0
      %381 = vmatprep.subr.bf16.mxu0 0
      %382 = vmatpush2.bf16.msra.mxu0 0
      %383 = vmatprep.subr.bf16.mxu0 0
      %384 = vmatpush2.bf16.msra.mxu0 0
      %385 = vmatprep.subr.bf16.mxu0 0
      %386 = vmatpush2.bf16.msra.mxu0 0
      %387 = vmatprep.mubr.bf16.mxu0 0
      %388 = vmatmul.mubr.bf16.gmra.mxu0 %v183
      %v389 = vpop.f32.mrf.mxu0
      %v390 = vadd.f32 %v302, %v389
      %v391 = vpop.f32.mrf.mxu0
      %v392 = vpop.f32.mrf.mxu0
      %v393 = vpop.f32.mrf.mxu0
      %394 = vdwg.mxu0
      %v395 = vld [vmem:[#allocation2 + $0x2] sm:$0xff]
      %v396 = vpack.c.bf16 %v395, %v395
      %s397 = scalar_lea.vmem %s1, 128
      %v398 = vld [vmem:[%s397] sm:$0xf]
      %v399 = vld [vmem:[%s397 + $0x4] sm:$0xf]
      %v400 = vld [vmem:[%s397 + $0x8] sm:$0xf]
      %v401 = vld [vmem:[%s397 + $0xc] sm:$0xf]
      %v402 = vld [vmem:[%s397 + $0x10] sm:$0xf]
      %v403 = vld [vmem:[%s397 + $0x14] sm:$0xf]
      %v404 = vld [vmem:[%s397 + $0x18] sm:$0xf]
      %v405 = vld [vmem:[%s397 + $0x1c] sm:$0xf]
      %v406 = vld [vmem:[%s397 + $0x20] sm:$0xf]
      %v407 = vld [vmem:[%s397 + $0x24] sm:$0xf]
      %v408 = vld [vmem:[%s397 + $0x28] sm:$0xf]
      %v409 = vld [vmem:[%s397 + $0x2c] sm:$0xf]
      %v410 = vld [vmem:[%s397 + $0x30] sm:$0xf]
      %v411 = vld [vmem:[%s397 + $0x34] sm:$0xf]
      %v412 = vld [vmem:[%s397 + $0x38] sm:$0xf]
      %v413 = vld [vmem:[%s397 + $0x3c] sm:$0xf]
      %v430 = vunpack.c.l.b16 %v398
      %v431 = vunpack.c.l.b16 %v399
      %v432 = vunpack.c.l.b16 %v400
      %v433 = vunpack.c.l.b16 %v401
      %v434 = vunpack.c.l.b16 %v402
      %v435 = vunpack.c.l.b16 %v403
      %v436 = vunpack.c.l.b16 %v404
      %v437 = vunpack.c.l.b16 %v405
      %v438 = vunpack.c.l.b16 %v406
      %v439 = vunpack.c.l.b16 %v407
      %v440 = vunpack.c.l.b16 %v408
      %v441 = vunpack.c.l.b16 %v409
      %v442 = vunpack.c.l.b16 %v410
      %v443 = vunpack.c.l.b16 %v411
      %v444 = vunpack.c.l.b16 %v412
      %v445 = vunpack.c.l.b16 %v413
      %v446 = vpack.c.b16 %v431, %v430
      %v447 = vpack.c.b16 %v433, %v432
      %v448 = vpack.c.b16 %v435, %v434
      %v449 = vpack.c.b16 %v437, %v436
      %v450 = vpack.c.b16 %v439, %v438
      %v451 = vpack.c.b16 %v441, %v440
      %v452 = vpack.c.b16 %v443, %v442
      %v453 = vpack.c.b16 %v445, %v444
      %462 = vmatprep.subr.bf16.mxu0 0
      %463 = vmatpush1.bf16.msra.mxu0 %v453
      %464 = vmatprep.subr.bf16.mxu0 0
      %465 = vmatpush1.bf16.msra.mxu0 %v452
      %466 = vmatprep.subr.bf16.mxu0 0
      %467 = vmatpush1.bf16.msra.mxu0 %v451
      %468 = vmatprep.subr.bf16.mxu0 0
      %469 = vmatpush1.bf16.msra.mxu0 %v450
      %470 = vmatprep.subr.bf16.mxu0 0
      %471 = vmatpush1.bf16.msra.mxu0 %v449
      %472 = vmatprep.subr.bf16.mxu0 0
      %473 = vmatpush1.bf16.msra.mxu0 %v448
      %474 = vmatprep.subr.bf16.mxu0 0
      %475 = vmatpush1.bf16.msra.mxu0 %v447
      %476 = vmatprep.subr.bf16.mxu0 0
      %477 = vmatpush1.bf16.msra.mxu0 %v446
      %478 = vmatprep.subr.bf16.mxu0 0
      %479 = vmatpush2.bf16.msra.mxu0 0
      %480 = vmatprep.subr.bf16.mxu0 0
      %481 = vmatpush2.bf16.msra.mxu0 0
      %482 = vmatprep.subr.bf16.mxu0 0
      %483 = vmatpush2.bf16.msra.mxu0 0
      %484 = vmatprep.subr.bf16.mxu0 0
      %485 = vmatpush2.bf16.msra.mxu0 0
      %486 = vmatprep.subr.bf16.mxu0 0
      %487 = vmatpush2.bf16.msra.mxu0 0
      %488 = vmatprep.subr.bf16.mxu0 0
      %489 = vmatpush2.bf16.msra.mxu0 0
      %490 = vmatprep.subr.bf16.mxu0 0
      %491 = vmatpush2.bf16.msra.mxu0 0
      %492 = vmatprep.subr.bf16.mxu0 0
      %493 = vmatpush2.bf16.msra.mxu0 0
      %494 = vmatprep.mubr.bf16.mxu0 0
      %495 = vmatmul.mubr.bf16.gmra.mxu0 %v396
      %v496 = vpop.f32.mrf.mxu0
      %v497 = vadd.f32 0.0, %v496
      %v498 = vpop.f32.mrf.mxu0
      %v499 = vpop.f32.mrf.mxu0
      %v500 = vpop.f32.mrf.mxu0
      %501 = vdwg.mxu0
      %v502 = vadd.f32 %v390, %v497
      %v503 = vpack.c.bf16 %v502, %v502
      %504 = vst [vmem:[%s172] sm:$0xf] %v503
      %v505 = vrot.slane %v502, 4
      %v506 = vadd.f32 %v502, %v505
      %v507 = vrot.slane %v506, 2
      %v508 = vadd.f32 %v506, %v507
      %v509 = vrot.slane %v508, 1
      %v510 = vadd.f32 %v508, %v509
      %v511 = vmul.f32 %v510, 0.125
      %v512 = vsub.f32 %v502, %v511
      %v513 = vmul.f32 %v512, %v512
      %v514 = vrot.slane %v513, 4
      %v515 = vadd.f32 %v513, %v514
      %v516 = vrot.slane %v515, 2
      %v517 = vadd.f32 %v515, %v516
      %v518 = vrot.slane %v517, 1
      %v519 = vadd.f32 %v517, %v518
      %vm520 = vcmask 1040384
      %v521 = vsel %vm520, %v510, %v519
      %522 = vst [vmem:[%s176] sm:$0x3] %v521
      %p523 = scmp.lt.s32.totalorder %s15, 1
      %s524 = scalar_select %p523, %s15, 1
      %s525 = smul.addr %s524, 4
      %s526 = scalar_lea.vmem %s2, %s525
      %p527 = scmp.lt.s32.totalorder %s15, 1
      %s528 = scalar_select %p527, %s15, 1
      %s529 = smul.addr %s528, 2
      %s530 = scalar_lea.vmem %s3, %s529
      // Predicated region
      $region29: #{res_block_forward.4} parent=27 // pred_check
        %p531 = pneg %p80
      $region30: #{res_block_forward.4} parent=27 // pred_check_branch
        %533 = sbr.rel (%p531) target = $region32
      $region31: #{res_block_forward.4} parent=27 // pred_region
        _
      $region32: #{res_block_forward.4} parent=27 // pred_fallthru
        _
      // Predicated region
      $region33: #{res_block_forward.4} parent=27 // pred_check
        %p534 = pneg %p106
      $region34: #{res_block_forward.4} parent=27 // pred_check_branch
        %536 = sbr.rel (%p534) target = $region36
      $region35: #{res_block_forward.4} parent=27 // pred_region
        _
      $region36: #{res_block_forward.4} parent=27 // pred_fallthru
        _
    $region28: #{res_block_forward.4} parent=5 // pred_fallthru
      _
    %p537 = scmp.le.s32.totalorder 2, %s10
    // Predicated region
    $region37: #{res_block_forward.4} parent=5 // pred_check
      %p538 = pneg %p537
    $region38: #{res_block_forward.4} parent=5 // pred_check_branch
      %540 = sbr.rel (%p538) target = $region40
    $region39: #{res_block_forward.4} parent=5 // pred_region
      %s541 = ssub.s32 %s10, 2
      // Predicated region
      $region41: #{res_block_forward.4} parent=39 // pred_check
        %p542 = pneg %p86
      $region42: #{res_block_forward.4} parent=39 // pred_check_branch
        %544 = sbr.rel (%p542) target = $region44
      $region43: #{res_block_forward.4} parent=39 // pred_region
        %p545 = scmp.lt.s32.totalorder %s16, 1
        %s546 = scalar_select %p545, %s16, 1
        %s547 = smul.addr %s546, 4
        %s548 = scalar_lea.vmem %s2, %s547
      $region44: #{res_block_forward.4} parent=39 // pred_fallthru
        _
      // Predicated region
      $region45: #{res_block_forward.4} parent=39 // pred_check
        %p549 = pneg %p112
      $region46: #{res_block_forward.4} parent=39 // pred_check_branch
        %551 = sbr.rel (%p549) target = $region48
      $region47: #{res_block_forward.4} parent=39 // pred_region
        %p552 = scmp.lt.s32.totalorder %s16, 1
        %s553 = scalar_select %p552, %s16, 1
        %s554 = smul.addr %s553, 2
        %s555 = scalar_lea.vmem %s3, %s554
      $region48: #{res_block_forward.4} parent=39 // pred_fallthru
        _
    $region40: #{res_block_forward.4} parent=5 // pred_fallthru
      _
  $region6: #{res_block_forward.4} parent=0 // loop_footer
    %s14 = sadd.s32 1, %s10
  $region7: #{res_block_forward.4} parent=0 // loop_footer_branch
    %9 = sbr.rel target = $region3
  $region8: #{res_block_forward.4} parent=0 // loop_exit
    _

// kernel: res_block_forward.5
$region0: #{res_block_forward.5}
  #allocation0 [shape = 'u32[]', space=smem, size = 0x4, offset = 0x4, fixed_abs, tag = 'smem constant byte address 0x4 - core index']
  #allocation1 [shape = 'u32[144,128]{1,0:T(1,128)}', space=vmem, size = 0x12000, scoped, tag = 'internal scratch']
  %s0 = inlined_call_operand.vmem [shape: f32[2,8,128], index: 0, kind: input, shape index: {}]
  %s1 = inlined_call_operand.vmem [shape: bf16[2,8,128], index: 1, kind: input, shape index: {}]
  %s2 = inlined_call_operand.vmem [shape: f32[1,128], index: 2, kind: input, shape index: {}]
  %s3 = inlined_call_operand.vmem [shape: f32[1,128], index: 3, kind: input, shape index: {}]
  %s4 = inlined_call_operand.vmem [shape: f32[2,8,128], index: 4, kind: output, shape index: {}]
  %s5 = sld [smem:[#allocation0]]
  $region49: #{res_block_forward.5} parent=0
    _
  %s7 = ssub.s32 1, %s5
  %s8 = scalar_select 0, %s7, %s5
  loop: start=0, step=1, limit=4
  $region2: #{res_block_forward.5} parent=0 // loop_pre_header
    _
  $region3: #{res_block_forward.5} parent=0 // loop_header
    %s10 = sphi 0, %s14
    %p11 = scmp.ge.s32.totalorder %s10, 4
    %s20 = sphi 0, %s22
    %s23 = sphi 0, %s20
    %s24 = sphi 0, %s23
    %s40 = sphi 0, %s24
    %s46 = sphi 0, %s48
    %s49 = sphi 0, %s46
    %s50 = sphi 0, %s49
    %s66 = sphi 0, %s50
    %s70 = sphi 0, %s70
    %s72 = sphi 0, %s70
    %s73 = sphi 0, %s72
    %s87 = sphi 0, %s73
    %s91 = sphi 0, %s91
    %s93 = sphi 0, %s91
    %s94 = sphi 0, %s93
    %s108 = sphi 0, %s94
    %s114 = sphi 0, %s116
    %s117 = sphi 0, %s114
    %s118 = sphi 0, %s117
    %s134 = sphi 0, %s118
  $region4: #{res_block_forward.5} parent=0 // loop_header_branch
    %13 = sbr.rel (%p11) target = $region8
  $region5: #{res_block_forward.5} parent=0 // loop_body
    %s15 = ssub.s32 %s10, 1
    %s16 = ssub.s32 %s10, 2
    %s17 = sadd.s32 %s10, 1
    %s18 = ssub.s32 %s10, %s17
    %p19 = scmp.eq.s32.totalorder %s18, 0
    %s21 = sadd.s32 %s20, 1
    %s22 = scalar_select %p19, %s20, %s21
    %p25 = pneg %p19
    %p26 = scmp.eq.s32.totalorder %s10, 1
    %p27 = por %p25, %p26
    %p28 = scmp.ne.s32.totalorder %s20, %s23
    %p29 = scmp.eq.s32.totalorder %s10, 0
    %p30 = por %p28, %p29
    %p31 = scmp.ne.s32.totalorder %s20, %s23
    %p32 = scmp.eq.s32.totalorder %s15, 1
    %p33 = por %p31, %p32
    %p34 = scmp.ne.s32.totalorder %s23, %s24
    %p35 = scmp.eq.s32.totalorder %s15, 0
    %p36 = por %p34, %p35
    %p37 = scmp.ne.s32.totalorder %s23, %s24
    %p38 = scmp.eq.s32.totalorder %s16, 1
    %p39 = por %p37, %p38
    %p41 = scmp.ne.s32.totalorder %s24, %s40
    %p42 = scmp.eq.s32.totalorder %s16, 0
    %p43 = por %p41, %p42
    %s44 = ssub.s32 %s10, %s17
    %p45 = scmp.eq.s32.totalorder %s44, 0
    %s47 = sadd.s32 %s46, 1
    %s48 = scalar_select %p45, %s46, %s47
    %p51 = pneg %p45
    %p52 = scmp.eq.s32.totalorder %s10, 1
    %p53 = por %p51, %p52
    %p54 = scmp.ne.s32.totalorder %s46, %s49
    %p55 = scmp.eq.s32.totalorder %s10, 0
    %p56 = por %p54, %p55
    %p57 = scmp.ne.s32.totalorder %s46, %s49
    %p58 = scmp.eq.s32.totalorder %s15, 1
    %p59 = por %p57, %p58
    %p60 = scmp.ne.s32.totalorder %s49, %s50
    %p61 = scmp.eq.s32.totalorder %s15, 0
    %p62 = por %p60, %p61
    %p63 = scmp.ne.s32.totalorder %s49, %s50
    %p64 = scmp.eq.s32.totalorder %s16, 1
    %p65 = por %p63, %p64
    %p67 = scmp.ne.s32.totalorder %s50, %s66
    %p68 = scmp.eq.s32.totalorder %s16, 0
    %p69 = por %p67, %p68
    %s71 = sadd.s32 %s70, 1
    %p74 = scmp.eq.s32.totalorder %s10, 1
    %p75 = scmp.ne.s32.totalorder %s70, %s72
    %p76 = scmp.eq.s32.totalorder %s10, 0
    %p77 = por %p75, %p76
    %p78 = scmp.ne.s32.totalorder %s70, %s72
    %p79 = scmp.eq.s32.totalorder %s15, 1
    %p80 = por %p78, %p79
    %p81 = scmp.ne.s32.totalorder %s72, %s73
    %p82 = scmp.eq.s32.totalorder %s15, 0
    %p83 = por %p81, %p82
    %p84 = scmp.ne.s32.totalorder %s72, %s73
    %p85 = scmp.eq.s32.totalorder %s16, 1
    %p86 = por %p84, %p85
    %p88 = scmp.ne.s32.totalorder %s73, %s87
    %p89 = scmp.eq.s32.totalorder %s16, 0
    %p90 = por %p88, %p89
    %s92 = sadd.s32 %s91, 1
    %p95 = scmp.eq.s32.totalorder %s10, 1
    %p96 = scmp.ne.s32.totalorder %s91, %s93
    %p97 = scmp.eq.s32.totalorder %s10, 0
    %p98 = por %p96, %p97
    %p99 = scmp.ne.s32.totalorder %s91, %s93
    %p100 = scmp.eq.s32.totalorder %s15, 1
    %p101 = por %p99, %p100
    %p102 = scmp.ne.s32.totalorder %s93, %s94
    %p103 = scmp.eq.s32.totalorder %s15, 0
    %p104 = por %p102, %p103
    %p105 = scmp.ne.s32.totalorder %s93, %s94
    %p106 = scmp.eq.s32.totalorder %s16, 1
    %p107 = por %p105, %p106
    %p109 = scmp.ne.s32.totalorder %s94, %s108
    %p110 = scmp.eq.s32.totalorder %s16, 0
    %p111 = por %p109, %p110
    %s112 = ssub.s32 %s10, %s17
    %p113 = scmp.eq.s32.totalorder %s112, 0
    %s115 = sadd.s32 %s114, 1
    %s116 = scalar_select %p113, %s114, %s115
    %p119 = pneg %p113
    %p120 = scmp.eq.s32.totalorder %s10, 1
    %p121 = por %p119, %p120
    %p122 = scmp.ne.s32.totalorder %s114, %s117
    %p123 = scmp.eq.s32.totalorder %s10, 0
    %p124 = por %p122, %p123
    %p125 = scmp.ne.s32.totalorder %s114, %s117
    %p126 = scmp.eq.s32.totalorder %s15, 1
    %p127 = por %p125, %p126
    %p128 = scmp.ne.s32.totalorder %s117, %s118
    %p129 = scmp.eq.s32.totalorder %s15, 0
    %p130 = por %p128, %p129
    %p131 = scmp.ne.s32.totalorder %s117, %s118
    %p132 = scmp.eq.s32.totalorder %s16, 1
    %p133 = por %p131, %p132
    %p135 = scmp.ne.s32.totalorder %s118, %s134
    %p136 = scmp.eq.s32.totalorder %s16, 0
    %p137 = por %p135, %p136
    %p138 = scmp.le.s32.totalorder 1, %s10
    %p139 = scmp.lt.s32.totalorder %s10, 3
    %p140 = pnand %p138, %p139
    %p141 = pneg %p140
    // Predicated region
    $region9: #{res_block_forward.5} parent=5 // pred_check
      _
    $region10: #{res_block_forward.5} parent=5 // pred_check_branch
      %143 = sbr.rel (%p140) target = $region12
    $region11: #{res_block_forward.5} parent=5 // pred_region
      %s144 = ssub.s32 %s10, 1
      // Predicated region
      $region13: #{res_block_forward.5} parent=11 // pred_check
        %p145 = pneg %p83
      $region14: #{res_block_forward.5} parent=11 // pred_check_branch
        %147 = sbr.rel (%p145) target = $region16
      $region15: #{res_block_forward.5} parent=11 // pred_region
        _
      $region16: #{res_block_forward.5} parent=11 // pred_fallthru
        _
      // Predicated region
      $region17: #{res_block_forward.5} parent=11 // pred_check
        %p148 = pneg %p104
      $region18: #{res_block_forward.5} parent=11 // pred_check_branch
        %150 = sbr.rel (%p148) target = $region20
      $region19: #{res_block_forward.5} parent=11 // pred_region
        _
      $region20: #{res_block_forward.5} parent=11 // pred_fallthru
        _
    $region12: #{res_block_forward.5} parent=5 // pred_fallthru
      _
    %p151 = scmp.lt.s32.totalorder %s10, 2
    // Predicated region
    $region21: #{res_block_forward.5} parent=5 // pred_check
      %p152 = pneg %p151
    $region22: #{res_block_forward.5} parent=5 // pred_check_branch
      %154 = sbr.rel (%p152) target = $region24
    $region23: #{res_block_forward.5} parent=5 // pred_region
      // Predicated region
      $region25: #{res_block_forward.5} parent=23 // pred_check
        %p155 = pneg %p30
      $region26: #{res_block_forward.5} parent=23 // pred_check_branch
        %157 = sbr.rel (%p155) target = $region28
      $region27: #{res_block_forward.5} parent=23 // pred_region
        %p158 = scmp.lt.s32.totalorder %s10, 1
        %s159 = scalar_select %p158, %s10, 1
        %s160 = smul.addr %s159, 8
        %s161 = scalar_lea.vmem %s0, %s160
      $region28: #{res_block_forward.5} parent=23 // pred_fallthru
        _
      // Predicated region
      $region29: #{res_block_forward.5} parent=23 // pred_check
        %p162 = pneg %p56
      $region30: #{res_block_forward.5} parent=23 // pred_check_branch
        %164 = sbr.rel (%p162) target = $region32
      $region31: #{res_block_forward.5} parent=23 // pred_region
        %p165 = scmp.lt.s32.totalorder %s10, 1
        %s166 = scalar_select %p165, %s10, 1
        %s167 = smul.addr %s166, 4
        %s168 = scalar_lea.vmem %s1, %s167
      $region32: #{res_block_forward.5} parent=23 // pred_fallthru
        _
    $region24: #{res_block_forward.5} parent=5 // pred_fallthru
      _
    %p169 = scmp.le.s32.totalorder 1, %s10
    %p170 = scmp.lt.s32.totalorder %s10, 3
    %p171 = pnand %p169, %p170
    %p172 = pneg %p171
    // Predicated region
    $region33: #{res_block_forward.5} parent=5 // pred_check
      _
    $region34: #{res_block_forward.5} parent=5 // pred_check_branch
      %174 = sbr.rel (%p171) target = $region36
    $region35: #{res_block_forward.5} parent=5 // pred_region
      %s175 = ssub.s32 %s10, 1
      %p176 = scmp.lt.s32.totalorder %s15, 1
      %s177 = scalar_select %p176, %s15, 1
      %s178 = smul.addr %s177, 8
      %s179 = scalar_lea.vmem %s0, %s178
      %p180 = pneg %p36
      %p181 = pneg %p33
      %p182 = scmp.lt.s32.totalorder %s15, 1
      %s183 = scalar_select %p182, %s15, 1
      %s184 = smul.addr %s183, 4
      %s185 = scalar_lea.vmem %s1, %s184
      %p186 = pneg %p62
      %p187 = pneg %p59
      %p188 = pneg %p83
      %p189 = pneg %p80
      %p190 = pneg %p104
      %p191 = pneg %p101
      %p192 = pneg %p130
      %p193 = pneg %p127
      %p194 = scmp.lt.s32.totalorder %s15, 1
      %s195 = scalar_select %p194, %s15, 1
      %s196 = smul.addr %s195, 8
      %s197 = scalar_lea.vmem %s4, %s196
      %p198 = scmp.lt.s32.totalorder %s15, 1
      %s199 = scalar_select %p198, %s15, 1
      %s200 = smul.addr %s199, 8
      %s201 = scalar_lea.vmem %s0, %s200
      %p202 = scmp.lt.s32.totalorder %s15, 1
      %s203 = scalar_select %p202, %s15, 1
      %s204 = smul.addr %s203, 4
      %s205 = scalar_lea.vmem %s1, %s204
      %p206 = scmp.lt.s32.totalorder %s15, 1
      %s207 = scalar_select %p206, %s15, 1
      %s208 = smul.addr %s207, 8
      %s209 = scalar_lea.vmem %s4, %s208
      %v210 = vld [vmem:[%s205] sm:$0xf]
      %v211 = vunpack.c.l.bf16 %v210
      %v212 = vld [vmem:[%s2] sm:$0x1]
      %v214 = vlaneseq
      %v215 = vshrl.u32 %v214, 7
      %v216 = vsub.s32 0, %v215
      %v217 = vrot.slane %v212, %v216
      %v219 = vmul.f32 %v211, %v217
      %v220 = vld [vmem:[%s3] sm:$0x1]
      %v222 = vlaneseq
      %v223 = vshrl.u32 %v222, 7
      %v224 = vsub.s32 0, %v223
      %v225 = vrot.slane %v220, %v224
      %v227 = vadd.f32 %v219, %v225
      %v228 = vld [vmem:[%s201] sm:$0xff]
      %v229 = vmax.f32 %v227, 0.0
      %v230 = vadd.f32 %v228, %v229
      %231 = vst [vmem:[%s209] sm:$0xff] %v230
      %p232 = scmp.lt.s32.totalorder %s15, 1
      %s233 = scalar_select %p232, %s15, 1
      %s234 = smul.addr %s233, 8
      %s235 = scalar_lea.vmem %s4, %s234
      // Predicated region
      $region37: #{res_block_forward.5} parent=35 // pred_check
        %p236 = pneg %p127
      $region38: #{res_block_forward.5} parent=35 // pred_check_branch
        %238 = sbr.rel (%p236) target = $region40
      $region39: #{res_block_forward.5} parent=35 // pred_region
        _
      $region40: #{res_block_forward.5} parent=35 // pred_fallthru
        _
    $region36: #{res_block_forward.5} parent=5 // pred_fallthru
      _
    %p239 = scmp.le.s32.totalorder 2, %s10
    // Predicated region
    $region41: #{res_block_forward.5} parent=5 // pred_check
      %p240 = pneg %p239
    $region42: #{res_block_forward.5} parent=5 // pred_check_branch
      %242 = sbr.rel (%p240) target = $region44
    $region43: #{res_block_forward.5} parent=5 // pred_region
      %s243 = ssub.s32 %s10, 2
      // Predicated region
      $region45: #{res_block_forward.5} parent=43 // pred_check
        %p244 = pneg %p133
      $region46: #{res_block_forward.5} parent=43 // pred_check_branch
        %246 = sbr.rel (%p244) target = $region48
      $region47: #{res_block_forward.5} parent=43 // pred_region
        %p247 = scmp.lt.s32.totalorder %s16, 1
        %s248 = scalar_select %p247, %s16, 1
        %s249 = smul.addr %s248, 8
        %s250 = scalar_lea.vmem %s4, %s249
      $region48: #{res_block_forward.5} parent=43 // pred_fallthru
        _
    $region44: #{res_block_forward.5} parent=5 // pred_fallthru
      _
  $region6: #{res_block_forward.5} parent=0 // loop_footer
    %s14 = sadd.s32 1, %s10
  $region7: #{res_block_forward.5} parent=0 // loop_footer_branch
    %9 = sbr.rel target = $region3
  $region8: #{res_block_forward.5} parent=0 // loop_exit
    _

</llo_original>
